<compile_context>
chip_gen: v7x
topology: tpu7x:2x2x1
jax: 0.10.0
libtpu: 0.0.40
codegen_flags: <defaults>
</compile_context>

<pallas_src>
import functools

import jax
import jax.numpy as jnp
from jax.experimental import pallas as pl
from jax.experimental.pallas import tpu as pltpu


# --------------------------------------------------------------------------- #
# Kernel
# --------------------------------------------------------------------------- #
def _pid_kernel(err_ref, perr_ref, pitgr_ref,
                w1_ref, b1_ref, w2_ref, b2_ref,
                w3_ref, b3_ref, w4_ref, b4_ref,
                out_ref, itgr_ref, *, time_step, mxu_dtype):
    """Feature-major PID forward.  All activation refs are (feature, TB)."""
    err = err_ref[...]                                   # (S,  TB) f32
    prev_err = perr_ref[...]
    prev_itgr = pitgr_ref[...]

    inv_ts = 1.0 / time_step                             # python consts, folded
    # _format: prev_* == 0 reproduces the torch "prev is None" branch exactly.
    err_dot = (err - prev_err) * inv_ts
    err_itgr = prev_itgr + time_step * err
    itgr_ref[...] = err_itgr                             # new integral state

    # Sublane concat (offsets 0, S, 2S with S=16 -> 8-aligned, cheap).
    x = jnp.concatenate([err, err_itgr, err_dot], axis=0)          # (3S, TB)

    # Fused P/I/D branches: block-diagonal 2-layer MLP, weights (out, in).
    h1 = jnp.dot(w1_ref[...], x.astype(mxu_dtype),
                 preferred_element_type=jnp.float32) + b1_ref[...]  # (3H, TB)
    h1 = jnp.maximum(h1, 0.0)
    pid_cat = jnp.dot(w2_ref[...], h1.astype(mxu_dtype),
                      preferred_element_type=jnp.float32) + b2_ref[...]  # (3A, TB)
    # pid_cat rows == torch.cat([p_output, i_output, d_output], dim=-1)

    # sum MLP
    h2 = jnp.dot(w3_ref[...], pid_cat.astype(mxu_dtype),
                 preferred_element_type=jnp.float32) + b3_ref[...]  # (H, TB)
    h2 = jnp.maximum(h2, 0.0)
    pid_out = jnp.dot(w4_ref[...], h2.astype(mxu_dtype),
                      preferred_element_type=jnp.float32) + b4_ref[...]  # (A, TB)
    pid_out = jnp.tanh(pid_out)

    # pid_rate = sigmoid(5*(rms-1)) == 0.5*(1 + tanh(2.5*(rms-1)))   (EUP slot)
    rms = jnp.sqrt(jnp.mean(err * err, axis=0, keepdims=True))      # (1, TB)
    pid_rate = 0.5 * (1.0 + jnp.tanh(2.5 * (rms - 1.0)))

    out_ref[...] = pid_rate * pid_out


# --------------------------------------------------------------------------- #
# Parameter packing (feature-major, block-diagonal P/I/D fusion)
# --------------------------------------------------------------------------- #
def _default_weight_dtype():
    """bf16 weights on v6e/v7x-class MXUs, pure f32 on v5e and older."""
    try:
        kind = jax.devices()[0].device_kind.lower()
    except Exception:
        return jnp.float32
    for tag in ("v2", "v3", "v4", "v5"):
        if tag in kind:
            return jnp.float32
    return jnp.bfloat16


def pack_params(params, state_dim, action_dim, hidden=64,
                weight_dtype=jnp.float32):
    """Pack the 3 PID branches + sum MLP into 4 (out, in) weights + 4 biases.

    Weights of the P/I/D branches are fused block-diagonally; biases stay f32
    as (out, 1) columns (lane-broadcast inside the kernel).
    """
    S, A, H = state_dim, action_dim, hidden

    def wT(w):                     # (in, out) -> (out, in)
        return jnp.asarray(w, jnp.float32).T

    def col(b):                    # (1, out) -> (out, 1)
        return jnp.asarray(b, jnp.float32).reshape(-1, 1)

    w1 = jnp.zeros((3 * H, 3 * S), jnp.float32)
    w1 = w1.at[0:H, 0:S].set(wT(params["P"]["w1"]))
    w1 = w1.at[H:2 * H, S:2 * S].set(wT(params["I"]["w1"]))
    w1 = w1.at[2 * H:3 * H, 2 * S:3 * S].set(wT(params["D"]["w1"]))
    b1 = jnp.concatenate([col(params["P"]["b1"]), col(params["I"]["b1"]),
                          col(params["D"]["b1"])], axis=0)          # (3H, 1)

    w2 = jnp.zeros((3 * A, 3 * H), jnp.float32)
    w2 = w2.at[0:A, 0:H].set(wT(params["P"]["w2"]))
    w2 = w2.at[A:2 * A, H:2 * H].set(wT(params["I"]["w2"]))
    w2 = w2.at[2 * A:3 * A, 2 * H:3 * H].set(wT(params["D"]["w2"]))
    b2 = jnp.concatenate([col(params["P"]["b2"]), col(params["I"]["b2"]),
                          col(params["D"]["b2"])], axis=0)          # (3A, 1)

    w3 = wT(params["sum"]["w1"])                                    # (H, 3A)
    b3 = col(params["sum"]["b1"])                                   # (H, 1)
    w4 = wT(params["sum"]["w2"])                                    # (A, H)
    b4 = col(params["sum"]["b2"])                                   # (A, 1)

    w1, w2, w3, w4 = (w.astype(weight_dtype) for w in (w1, w2, w3, w4))
    return (w1, b1, w2, b2, w3, b3, w4, b4)


# --------------------------------------------------------------------------- #
# Wrapper
# --------------------------------------------------------------------------- #
def _pick_batch_tile(batch):
    """Lane (batch) tile: single block for small B, otherwise a multiple of 128
    with >=2 grid steps (v7x megacore), capped at 2048 to bound per-step VMEM
    (~0.6 MiB of activations at TB=2048 — far below any VMEM limit)."""
    if batch < 256:
        return batch
    half = -(-batch // 2)                    # cdiv(batch, 2)
    tb = ((half + 127) // 128) * 128         # round up to lane width
    return min(tb, 2048)


def pid_network_forward(error, packed_params, state_dim, action_dim, hidden=64,
                        prev_error=None, prev_error_itgr=None, time_step=1.0):
    """Replicates PidNetwork._format + forward (eval-mode dropout)."""
    error = jnp.asarray(error, jnp.float32)
    if error.ndim == 1:
        error = error[None, :]
    B, S = error.shape
    assert S == state_dim
    A, H = action_dim, hidden

    # Feature-major (batch in lanes).
    err_t = error.T                                                 # (S, B)
    if prev_error is None or prev_error_itgr is None:
        prev_err_t = jnp.zeros_like(err_t)
        prev_itgr_t = jnp.zeros_like(err_t)
    else:
        prev_err_t = jnp.asarray(prev_error, jnp.float32).reshape(B, S).T
        prev_itgr_t = jnp.asarray(prev_error_itgr, jnp.float32).reshape(B, S).T

    w1, b1, w2, b2, w3, b3, w4, b4 = packed_params
    mxu_dtype = w1.dtype

    TB = _pick_batch_tile(B)
    grid = (pl.cdiv(B, TB),)

    act_spec = pl.BlockSpec((S, TB), lambda i: (0, i))
    out_spec = pl.BlockSpec((A, TB), lambda i: (0, i))
    itgr_spec = pl.BlockSpec((S, TB), lambda i: (0, i))

    def const_spec(arr):
        # Constant block index -> weights/biases stay resident in VMEM; the
        # pipeline only fetches them once (total ~64 KB even double-buffered).
        return pl.BlockSpec(arr.shape, lambda i: (0, 0))

    kernel = functools.partial(_pid_kernel,
                               time_step=float(time_step),
                               mxu_dtype=mxu_dtype)

    out_t, itgr_t = pl.pallas_call(
        kernel,
        grid=grid,
        in_specs=[act_spec, act_spec, act_spec,
                  const_spec(w1), const_spec(b1),
                  const_spec(w2), const_spec(b2),
                  const_spec(w3), const_spec(b3),
                  const_spec(w4), const_spec(b4)],
        out_specs=(out_spec, itgr_spec),
        out_shape=(jax.ShapeDtypeStruct((A, B), jnp.float32),
                   jax.ShapeDtypeStruct((S, B), jnp.float32)),
        compiler_params=pltpu.CompilerParams(
            dimension_semantics=("parallel",)),
    )(err_t, prev_err_t, prev_itgr_t, w1, b1, w2, b2, w3, b3, w4, b4)

    # Back to batch-major for the caller; state for the next call.
    return out_t.T, (error, itgr_t.T)


# --------------------------------------------------------------------------- #
# Pure-JAX reference (batch-major, mirrors the torch module in eval mode)
# --------------------------------------------------------------------------- #
def pid_reference(error, params, prev_error=None, prev_itgr=None, time_step=1.0):
    error = jnp.asarray(error, jnp.float32)
    if prev_itgr is None:
        err_dot = error / time_step
        err_itgr = time_step * error
    else:
        err_dot = (error - prev_error) / time_step
        err_itgr = prev_itgr + time_step * error

    def mlp(x, p):
        h = jnp.maximum(x @ p["w1"] + p["b1"], 0.0)
        return h @ p["w2"] + p["b2"]

    p_out = mlp(error, params["P"])
    i_out = mlp(err_itgr, params["I"])
    d_out = mlp(err_dot, params["D"])
    pid_in = jnp.concatenate([p_out, i_out, d_out], axis=-1)
    pid_out = jnp.tanh(mlp(pid_in, params["sum"]))
    rms = jnp.sqrt(jnp.mean(error ** 2, axis=1, keepdims=True))
    rate = 1.0 / (1.0 + jnp.exp(-5.0 * (rms - 1.0)))
    return rate * pid_out, err_itgr


# --------------------------------------------------------------------------- #
# Synthetic init (weights (in, out), biases (1, out))
# --------------------------------------------------------------------------- #
def init_params(key, state_dim, action_dim, hidden=64):
    keys = jax.random.split(key, 8)

    def linear(kw, kb, fan_in, fan_out):
        w = jax.random.normal(kw, (fan_in, fan_out), jnp.float32) * 0.1
        b = jax.random.normal(kb, (1, fan_out), jnp.float32) * 0.01
        return w, b

    def branch(k0, k1, in_dim):
        w1, b1 = linear(k0, jax.random.fold_in(k0, 1), in_dim, hidden)
        w2, b2 = linear(k1, jax.random.fold_in(k1, 1), hidden, action_dim)
        return {"w1": w1, "b1": b1, "w2": w2, "b2": b2}

    return {
        "P": branch(keys[0], keys[1], state_dim),
        "I": branch(keys[2], keys[3], state_dim),
        "D": branch(keys[4], keys[5], state_dim),
        "sum": branch(keys[6], keys[7], action_dim * 3),
    }


if __name__ == "__main__":
    key = jax.random.PRNGKey(0)
    k_param, k_err, k_big = jax.random.split(key, 3)

    batch = 8
    state_dim = 16
    action_dim = 8
    hidden_dim = 64

    raw_params = init_params(k_param, state_dim, action_dim, hidden_dim)
    wdtype = _default_weight_dtype()
    packed = pack_params(raw_params, state_dim, action_dim, hidden_dim,
                         weight_dtype=wdtype)
    tol = 1e-1 if wdtype == jnp.bfloat16 else 5e-3

    error = jax.random.normal(k_err, (batch, state_dim), jnp.float32)

    # First call (no previous state -> torch "prev is None" branch).
    out, (prev_err, prev_itgr) = pid_network_forward(
        error, packed, state_dim, action_dim, hidden_dim)
    out = jax.block_until_ready(out)
    ref_out, ref_itgr = pid_reference(error, raw_params)
    assert out.shape == (batch, action_dim)
    assert bool(jnp.all(jnp.isfinite(out)))
    assert bool(jnp.allclose(out, ref_out, atol=tol, rtol=tol))
    assert bool(jnp.allclose(prev_itgr, ref_itgr, atol=1e-5, rtol=1e-5))

    # Second stateful call exercises the prev_error / prev_error_itgr path.
    out2, _ = pid_network_forward(
        error, packed, state_dim, action_dim, hidden_dim,
        prev_error=prev_err, prev_error_itgr=prev_itgr)
    out2 = jax.block_until_ready(out2)
    ref_out2, _ = pid_reference(error, raw_params,
                                prev_error=error, prev_itgr=ref_itgr)
    assert bool(jnp.allclose(out2, ref_out2, atol=tol, rtol=tol))

    # Ragged multi-tile batch (grid=2, partial last tile) exercises the
    # tiled/pipelined path and the clipped-writeback correctness concern.
    big_batch = 300
    big_err = jax.random.normal(k_big, (big_batch, state_dim), jnp.float32)
    out3, _ = pid_network_forward(
        big_err, packed, state_dim, action_dim, hidden_dim)
    out3 = jax.block_until_ready(out3)
    ref_out3, _ = pid_reference(big_err, raw_params)
    assert out3.shape == (big_batch, action_dim)
    assert bool(jnp.all(jnp.isfinite(out3)))
    assert bool(jnp.allclose(out3, ref_out3, atol=tol, rtol=tol))

    print("KERNEL_OK")
</pallas_src>

<mosaic_0001>
module attributes {stable_mosaic.version = 11 : i64} {
  func.func @_pid_kernel(%arg0: i32, %arg1: memref<16x8xf32, #tpu.memory_space<vmem>>, %arg2: memref<16x8xf32, #tpu.memory_space<vmem>>, %arg3: memref<16x8xf32, #tpu.memory_space<vmem>>, %arg4: memref<192x48xbf16, #tpu.memory_space<vmem>>, %arg5: memref<192x1xf32, #tpu.memory_space<vmem>>, %arg6: memref<24x192xbf16, #tpu.memory_space<vmem>>, %arg7: memref<24x1xf32, #tpu.memory_space<vmem>>, %arg8: memref<64x24xbf16, #tpu.memory_space<vmem>>, %arg9: memref<64x1xf32, #tpu.memory_space<vmem>>, %arg10: memref<8x64xbf16, #tpu.memory_space<vmem>>, %arg11: memref<8x1xf32, #tpu.memory_space<vmem>>, %arg12: memref<8x8xf32, #tpu.memory_space<vmem>>, %arg13: memref<16x8xf32, #tpu.memory_space<vmem>>) attributes {dimension_semantics = [#tpu.dimension_semantics<parallel>], iteration_bounds = array<i64: 1>, scalar_prefetch = 0 : i64, scratch_operands = 0 : i64, tpu.core_type = #tpu.core_type<tc>, window_params = [{transform_indices = @transform_0, window_bounds = array<i64: 16, 8>}, {transform_indices = @transform_1, window_bounds = array<i64: 16, 8>}, {transform_indices = @transform_2, window_bounds = array<i64: 16, 8>}, {pipeline_mode = #tpu.pipeline_mode<synchronous>, transform_indices = @transform_3, window_bounds = array<i64: 192, 48>}, {pipeline_mode = #tpu.pipeline_mode<synchronous>, transform_indices = @transform_4, window_bounds = array<i64: 192, 1>}, {pipeline_mode = #tpu.pipeline_mode<synchronous>, transform_indices = @transform_5, window_bounds = array<i64: 24, 192>}, {pipeline_mode = #tpu.pipeline_mode<synchronous>, transform_indices = @transform_6, window_bounds = array<i64: 24, 1>}, {pipeline_mode = #tpu.pipeline_mode<synchronous>, transform_indices = @transform_7, window_bounds = array<i64: 64, 24>}, {pipeline_mode = #tpu.pipeline_mode<synchronous>, transform_indices = @transform_8, window_bounds = array<i64: 64, 1>}, {pipeline_mode = #tpu.pipeline_mode<synchronous>, transform_indices = @transform_9, window_bounds = array<i64: 8, 64>}, {pipeline_mode = #tpu.pipeline_mode<synchronous>, transform_indices = @transform_10, window_bounds = array<i64: 8, 1>}, {transform_indices = @transform_11, window_bounds = array<i64: 8, 8>}, {transform_indices = @transform_12, window_bounds = array<i64: 16, 8>}]} {
    %c0 = arith.constant 0 : index
    %c0_0 = arith.constant 0 : index
    %0 = vector.load %arg1[%c0, %c0_0] : memref<16x8xf32, #tpu.memory_space<vmem>>, vector<16x8xf32>
    %c0_1 = arith.constant 0 : index
    %c0_2 = arith.constant 0 : index
    %1 = vector.load %arg2[%c0_1, %c0_2] : memref<16x8xf32, #tpu.memory_space<vmem>>, vector<16x8xf32>
    %c0_3 = arith.constant 0 : index
    %c0_4 = arith.constant 0 : index
    %2 = vector.load %arg3[%c0_3, %c0_4] : memref<16x8xf32, #tpu.memory_space<vmem>>, vector<16x8xf32>
    %3 = arith.subf %0, %1 : vector<16x8xf32>
    %cst = arith.constant 1.000000e+00 : f32
    %4 = vector.broadcast %cst : f32 to vector<16x8xf32>
    %5 = arith.mulf %3, %4 : vector<16x8xf32>
    %cst_5 = arith.constant 1.000000e+00 : f32
    %6 = vector.broadcast %cst_5 : f32 to vector<16x8xf32>
    %7 = arith.mulf %6, %0 : vector<16x8xf32>
    %8 = arith.addf %2, %7 : vector<16x8xf32>
    %c0_6 = arith.constant 0 : index
    %c0_7 = arith.constant 0 : index
    %9 = vector.load %arg13[%c0_6, %c0_7] : memref<16x8xf32, #tpu.memory_space<vmem>>, vector<16x8xf32>
    tpu.vector_store %arg13[%c0_6, %c0_7], %8 {strides = array<i32>} : memref<16x8xf32, #tpu.memory_space<vmem>>, vector<16x8xf32>,
    %10 = tpu.concatenate %0, %8, %5 in 0 : vector<16x8xf32>, vector<16x8xf32>, vector<16x8xf32> -> vector<48x8xf32>
    %c0_8 = arith.constant 0 : index
    %c0_9 = arith.constant 0 : index
    %11 = vector.load %arg4[%c0_8, %c0_9] : memref<192x48xbf16, #tpu.memory_space<vmem>>, vector<192x48xbf16>
    %12 = arith.truncf %10 : vector<48x8xf32> to vector<48x8xbf16>
    %cst_10 = arith.constant dense<0.000000e+00> : vector<192x8xf32>
    %13 = tpu.matmul %11, %12, %cst_10 {dimension_numbers = #tpu.dot_dimension_numbers<[1], [0], [0], [1], [0, 0, 1, 1], [], []>} : vector<192x48xbf16>, vector<48x8xbf16>, vector<192x8xf32> -> vector<192x8xf32>
    %c0_11 = arith.constant 0 : index
    %c0_12 = arith.constant 0 : index
    %14 = vector.load %arg5[%c0_11, %c0_12] : memref<192x1xf32, #tpu.memory_space<vmem>>, vector<192x1xf32>
    %15 = vector.broadcast %14 : vector<192x1xf32> to vector<192x8xf32>
    %16 = arith.addf %13, %15 : vector<192x8xf32>
    %cst_13 = arith.constant 0.000000e+00 : f32
    %17 = vector.broadcast %cst_13 : f32 to vector<192x8xf32>
    %18 = arith.maximumf %16, %17 : vector<192x8xf32>
    %c0_14 = arith.constant 0 : index
    %c0_15 = arith.constant 0 : index
    %19 = vector.load %arg6[%c0_14, %c0_15] : memref<24x192xbf16, #tpu.memory_space<vmem>>, vector<24x192xbf16>
    %20 = arith.truncf %18 : vector<192x8xf32> to vector<192x8xbf16>
    %cst_16 = arith.constant dense<0.000000e+00> : vector<24x8xf32>
    %21 = tpu.matmul %19, %20, %cst_16 {dimension_numbers = #tpu.dot_dimension_numbers<[1], [0], [0], [1], [0, 0, 1, 1], [], []>} : vector<24x192xbf16>, vector<192x8xbf16>, vector<24x8xf32> -> vector<24x8xf32>
    %c0_17 = arith.constant 0 : index
    %c0_18 = arith.constant 0 : index
    %22 = vector.load %arg7[%c0_17, %c0_18] : memref<24x1xf32, #tpu.memory_space<vmem>>, vector<24x1xf32>
    %23 = vector.broadcast %22 : vector<24x1xf32> to vector<24x8xf32>
    %24 = arith.addf %21, %23 : vector<24x8xf32>
    %c0_19 = arith.constant 0 : index
    %c0_20 = arith.constant 0 : index
    %25 = vector.load %arg8[%c0_19, %c0_20] : memref<64x24xbf16, #tpu.memory_space<vmem>>, vector<64x24xbf16>
    %26 = arith.truncf %24 : vector<24x8xf32> to vector<24x8xbf16>
    %cst_21 = arith.constant dense<0.000000e+00> : vector<64x8xf32>
    %27 = tpu.matmul %25, %26, %cst_21 {dimension_numbers = #tpu.dot_dimension_numbers<[1], [0], [0], [1], [0, 0, 1, 1], [], []>} : vector<64x24xbf16>, vector<24x8xbf16>, vector<64x8xf32> -> vector<64x8xf32>
    %c0_22 = arith.constant 0 : index
    %c0_23 = arith.constant 0 : index
    %28 = vector.load %arg9[%c0_22, %c0_23] : memref<64x1xf32, #tpu.memory_space<vmem>>, vector<64x1xf32>
    %29 = vector.broadcast %28 : vector<64x1xf32> to vector<64x8xf32>
    %30 = arith.addf %27, %29 : vector<64x8xf32>
    %cst_24 = arith.constant 0.000000e+00 : f32
    %31 = vector.broadcast %cst_24 : f32 to vector<64x8xf32>
    %32 = arith.maximumf %30, %31 : vector<64x8xf32>
    %c0_25 = arith.constant 0 : index
    %c0_26 = arith.constant 0 : index
    %33 = vector.load %arg10[%c0_25, %c0_26] : memref<8x64xbf16, #tpu.memory_space<vmem>>, vector<8x64xbf16>
    %34 = arith.truncf %32 : vector<64x8xf32> to vector<64x8xbf16>
    %cst_27 = arith.constant dense<0.000000e+00> : vector<8x8xf32>
    %35 = tpu.matmul %33, %34, %cst_27 {dimension_numbers = #tpu.dot_dimension_numbers<[1], [0], [0], [1], [0, 0, 1, 1], [], []>} : vector<8x64xbf16>, vector<64x8xbf16>, vector<8x8xf32> -> vector<8x8xf32>
    %c0_28 = arith.constant 0 : index
    %c0_29 = arith.constant 0 : index
    %36 = vector.load %arg11[%c0_28, %c0_29] : memref<8x1xf32, #tpu.memory_space<vmem>>, vector<8x1xf32>
    %37 = vector.broadcast %36 : vector<8x1xf32> to vector<8x8xf32>
    %38 = arith.addf %35, %37 : vector<8x8xf32>
    %39 = math.tanh %38 : vector<8x8xf32>
    %40 = arith.mulf %0, %0 : vector<16x8xf32>
    %cst_30 = arith.constant dense<0.000000e+00> : vector<8xf32>
    %41 = vector.multi_reduction <add>, %40, %cst_30 [0] : vector<16x8xf32> to vector<8xf32>
    %42 = vector.shape_cast %41 : vector<8xf32> to vector<1x8xf32>
    %cst_31 = arith.constant 1.600000e+01 : f32
    %43 = vector.broadcast %cst_31 : f32 to vector<1x8xf32>
    %44 = arith.divf %42, %43 : vector<1x8xf32>
    %45 = math.sqrt %44 : vector<1x8xf32>
    %cst_32 = arith.constant 1.000000e+00 : f32
    %46 = vector.broadcast %cst_32 : f32 to vector<1x8xf32>
    %47 = arith.subf %45, %46 : vector<1x8xf32>
    %cst_33 = arith.constant 2.500000e+00 : f32
    %48 = vector.broadcast %cst_33 : f32 to vector<1x8xf32>
    %49 = arith.mulf %48, %47 : vector<1x8xf32>
    %50 = math.tanh %49 : vector<1x8xf32>
    %cst_34 = arith.constant 1.000000e+00 : f32
    %51 = vector.broadcast %cst_34 : f32 to vector<1x8xf32>
    %52 = arith.addf %51, %50 : vector<1x8xf32>
    %cst_35 = arith.constant 5.000000e-01 : f32
    %53 = vector.broadcast %cst_35 : f32 to vector<1x8xf32>
    %54 = arith.mulf %53, %52 : vector<1x8xf32>
    %55 = vector.broadcast %54 : vector<1x8xf32> to vector<8x8xf32>
    %56 = arith.mulf %55, %39 : vector<8x8xf32>
    %c0_36 = arith.constant 0 : index
    %c0_37 = arith.constant 0 : index
    %57 = vector.load %arg12[%c0_36, %c0_37] : memref<8x8xf32, #tpu.memory_space<vmem>>, vector<8x8xf32>
    tpu.vector_store %arg12[%c0_36, %c0_37], %56 {strides = array<i32>} : memref<8x8xf32, #tpu.memory_space<vmem>>, vector<8x8xf32>,
    return
  }
  func.func @transform_0(%arg0: i32) -> (i32, i32) {
    %c0_i32 = arith.constant 0 : i32
    %c0_i32_0 = arith.constant 0 : i32
    return %c0_i32, %arg0 : i32, i32
  }
  func.func @transform_1(%arg0: i32) -> (i32, i32) {
    %c0_i32 = arith.constant 0 : i32
    %c0_i32_0 = arith.constant 0 : i32
    return %c0_i32, %arg0 : i32, i32
  }
  func.func @transform_2(%arg0: i32) -> (i32, i32) {
    %c0_i32 = arith.constant 0 : i32
    %c0_i32_0 = arith.constant 0 : i32
    return %c0_i32, %arg0 : i32, i32
  }
  func.func @transform_3(%arg0: i32) -> (i32, i32) {
    %c0_i32 = arith.constant 0 : i32
    %c0_i32_0 = arith.constant 0 : i32
    %c0_i32_1 = arith.constant 0 : i32
    return %c0_i32, %c0_i32_0 : i32, i32
  }
  func.func @transform_4(%arg0: i32) -> (i32, i32) {
    %c0_i32 = arith.constant 0 : i32
    %c0_i32_0 = arith.constant 0 : i32
    %c0_i32_1 = arith.constant 0 : i32
    return %c0_i32, %c0_i32_0 : i32, i32
  }
  func.func @transform_5(%arg0: i32) -> (i32, i32) {
    %c0_i32 = arith.constant 0 : i32
    %c0_i32_0 = arith.constant 0 : i32
    %c0_i32_1 = arith.constant 0 : i32
    return %c0_i32, %c0_i32_0 : i32, i32
  }
  func.func @transform_6(%arg0: i32) -> (i32, i32) {
    %c0_i32 = arith.constant 0 : i32
    %c0_i32_0 = arith.constant 0 : i32
    %c0_i32_1 = arith.constant 0 : i32
    return %c0_i32, %c0_i32_0 : i32, i32
  }
  func.func @transform_7(%arg0: i32) -> (i32, i32) {
    %c0_i32 = arith.constant 0 : i32
    %c0_i32_0 = arith.constant 0 : i32
    %c0_i32_1 = arith.constant 0 : i32
    return %c0_i32, %c0_i32_0 : i32, i32
  }
  func.func @transform_8(%arg0: i32) -> (i32, i32) {
    %c0_i32 = arith.constant 0 : i32
    %c0_i32_0 = arith.constant 0 : i32
    %c0_i32_1 = arith.constant 0 : i32
    return %c0_i32, %c0_i32_0 : i32, i32
  }
  func.func @transform_9(%arg0: i32) -> (i32, i32) {
    %c0_i32 = arith.constant 0 : i32
    %c0_i32_0 = arith.constant 0 : i32
    %c0_i32_1 = arith.constant 0 : i32
    return %c0_i32, %c0_i32_0 : i32, i32
  }
  func.func @transform_10(%arg0: i32) -> (i32, i32) {
    %c0_i32 = arith.constant 0 : i32
    %c0_i32_0 = arith.constant 0 : i32
    %c0_i32_1 = arith.constant 0 : i32
    return %c0_i32, %c0_i32_0 : i32, i32
  }
  func.func @transform_11(%arg0: i32) -> (i32, i32) {
    %c0_i32 = arith.constant 0 : i32
    %c0_i32_0 = arith.constant 0 : i32
    return %c0_i32, %arg0 : i32, i32
  }
  func.func @transform_12(%arg0: i32) -> (i32, i32) {
    %c0_i32 = arith.constant 0 : i32
    %c0_i32_0 = arith.constant 0 : i32
    return %c0_i32, %arg0 : i32, i32
  }
}

</mosaic_0001>

<llo_original>
// kernel: tpu_custom_call.1
$region0: #{tpu_custom_call.1}
  #allocation0 [shape = 'u32[]', space=smem, size = 0x4, offset = 0x4, fixed_abs, tag = 'smem constant byte address 0x4 - core index']
  #allocation1 [shape = 'u32[144,128]{1,0:T(1,128)}', space=vmem, size = 0x12000, scoped, tag = 'internal scratch']
  %s0 = inlined_call_operand.vmem [shape: f32[16,8], index: 0, kind: input, shape index: {}]
  %s1 = inlined_call_operand.vmem [shape: f32[16,8], index: 1, kind: input, shape index: {}]
  %s2 = inlined_call_operand.vmem [shape: f32[16,8], index: 2, kind: input, shape index: {}]
  %s3 = inlined_call_operand.vmem [shape: bf16[192,48], index: 3, kind: input, shape index: {}]
  %s4 = inlined_call_operand.vmem [shape: f32[192,1], index: 4, kind: input, shape index: {}]
  %s5 = inlined_call_operand.vmem [shape: bf16[24,192], index: 5, kind: input, shape index: {}]
  %s6 = inlined_call_operand.vmem [shape: f32[24,1], index: 6, kind: input, shape index: {}]
  %s7 = inlined_call_operand.vmem [shape: bf16[64,24], index: 7, kind: input, shape index: {}]
  %s8 = inlined_call_operand.vmem [shape: f32[64,1], index: 8, kind: input, shape index: {}]
  %s9 = inlined_call_operand.vmem [shape: bf16[8,64], index: 9, kind: input, shape index: {}]
  %s10 = inlined_call_operand.vmem [shape: f32[8,1], index: 10, kind: input, shape index: {}]
  %s11 = inlined_call_operand.hbm [shape: f32[8,8], index: 11, kind: output, shape index: {0}]
  %s12 = inlined_call_operand.vmem [shape: f32[16,8], index: 12, kind: output, shape index: {1}]
  %13 = xla_tuple %s11, %s12
  %s14 = sld [smem:[#allocation0]]
  $region62: #{tpu_custom_call.1} parent=0
    _
  %s16 = ssub.s32 1, %s14
  %s17 = scalar_select 0, %s16, %s14
  $region1: #{tpu_custom_call.1} parent=0
    #allocation2 [shape = 'u8[4096]{0}', space=vmem, size = 0x1000, scoped, tag = 'output window, operand 0, single buffered']
    #allocation3 [shape = 's32[1]{0}', space=sflag, size = 0x4, scoped, tag = 'scoped memory for tpu_custom_call.1']
    %18 = vsyncpa [#allocation3], 0
    // Predicated region
    $region2: #{tpu_custom_call.1} parent=1 // pred_check
      _
    $region3: #{tpu_custom_call.1} parent=1 // pred_check_branch
      %20 = sbr.rel (0) target = $region5
    $region4: #{tpu_custom_call.1} parent=1 // pred_region
      _
    $region5: #{tpu_custom_call.1} parent=1 // pred_fallthru
      _
    // Predicated region
    $region6: #{tpu_custom_call.1} parent=1 // pred_check
      _
    $region7: #{tpu_custom_call.1} parent=1 // pred_check_branch
      %22 = sbr.rel (0) target = $region9
    $region8: #{tpu_custom_call.1} parent=1 // pred_region
      _
    $region9: #{tpu_custom_call.1} parent=1 // pred_fallthru
      _
    // Predicated region
    $region10: #{tpu_custom_call.1} parent=1 // pred_check
      _
    $region11: #{tpu_custom_call.1} parent=1 // pred_check_branch
      %24 = sbr.rel (0) target = $region13
    $region12: #{tpu_custom_call.1} parent=1 // pred_region
      _
    $region13: #{tpu_custom_call.1} parent=1 // pred_fallthru
      _
    // Predicated region
    $region14: #{tpu_custom_call.1} parent=1 // pred_check
      _
    $region15: #{tpu_custom_call.1} parent=1 // pred_check_branch
      %26 = sbr.rel (0) target = $region17
    $region16: #{tpu_custom_call.1} parent=1 // pred_region
      _
    $region17: #{tpu_custom_call.1} parent=1 // pred_fallthru
      _
    // Predicated region
    $region18: #{tpu_custom_call.1} parent=1 // pred_check
      _
    $region19: #{tpu_custom_call.1} parent=1 // pred_check_branch
      %28 = sbr.rel (0) target = $region21
    $region20: #{tpu_custom_call.1} parent=1 // pred_region
      _
    $region21: #{tpu_custom_call.1} parent=1 // pred_fallthru
      _
    // Predicated region
    $region22: #{tpu_custom_call.1} parent=1 // pred_check
      _
    $region23: #{tpu_custom_call.1} parent=1 // pred_check_branch
      %30 = sbr.rel (0) target = $region25
    $region24: #{tpu_custom_call.1} parent=1 // pred_region
      _
    $region25: #{tpu_custom_call.1} parent=1 // pred_fallthru
      _
    // Predicated region
    $region26: #{tpu_custom_call.1} parent=1 // pred_check
      _
    $region27: #{tpu_custom_call.1} parent=1 // pred_check_branch
      %32 = sbr.rel (0) target = $region29
    $region28: #{tpu_custom_call.1} parent=1 // pred_region
      _
    $region29: #{tpu_custom_call.1} parent=1 // pred_fallthru
      _
    // Predicated region
    $region30: #{tpu_custom_call.1} parent=1 // pred_check
      _
    $region31: #{tpu_custom_call.1} parent=1 // pred_check_branch
      %34 = sbr.rel (0) target = $region33
    $region32: #{tpu_custom_call.1} parent=1 // pred_region
      _
    $region33: #{tpu_custom_call.1} parent=1 // pred_fallthru
      _
    // Predicated region
    $region34: #{tpu_custom_call.1} parent=1 // pred_check
      _
    $region35: #{tpu_custom_call.1} parent=1 // pred_check_branch
      %36 = sbr.rel (0) target = $region37
    $region36: #{tpu_custom_call.1} parent=1 // pred_region
      _
    $region37: #{tpu_custom_call.1} parent=1 // pred_fallthru
      _
    // Predicated region
    $region38: #{tpu_custom_call.1} parent=1 // pred_check
      _
    $region39: #{tpu_custom_call.1} parent=1 // pred_check_branch
      %38 = sbr.rel (0) target = $region41
    $region40: #{tpu_custom_call.1} parent=1 // pred_region
      _
    $region41: #{tpu_custom_call.1} parent=1 // pred_fallthru
      _
    // Predicated region
    $region42: #{tpu_custom_call.1} parent=1 // pred_check
      _
    $region43: #{tpu_custom_call.1} parent=1 // pred_check_branch
      %40 = sbr.rel (0) target = $region45
    $region44: #{tpu_custom_call.1} parent=1 // pred_region
      _
    $region45: #{tpu_custom_call.1} parent=1 // pred_fallthru
      _
    %v42 = vld [vmem:[%s0] sm:$0xff]
    %v43 = vld [vmem:[%s0 + $0x8] sm:$0xff]
    %v44 = vld [vmem:[%s1] sm:$0xff]
    %v45 = vld [vmem:[%s1 + $0x8] sm:$0xff]
    %v46 = vld [vmem:[%s2] sm:$0xff]
    %v47 = vld [vmem:[%s2 + $0x8] sm:$0xff]
    %v48 = vsub.f32 %v42, %v44
    %v49 = vsub.f32 %v43, %v45
    %v50 = vadd.f32 %v46, %v42
    %v51 = vadd.f32 %v47, %v43
    %vm52 = vcmask 64512
    %53 = vst.msk [vmem:[%s12] sm:$0xff] %vm52, %v50
    %54 = vst.msk [vmem:[%s12 + $0x8] sm:$0xff] %vm52, %v51
    %v55 = vld [vmem:[%s3] sm:$0xf]
    %v56 = vld [vmem:[%s3 + $0x4] sm:$0xf]
    %v57 = vld [vmem:[%s3 + $0x8] sm:$0xf]
    %v58 = vld [vmem:[%s3 + $0xc] sm:$0xf]
    %v59 = vld [vmem:[%s3 + $0x10] sm:$0xf]
    %v60 = vld [vmem:[%s3 + $0x14] sm:$0xf]
    %v61 = vld [vmem:[%s3 + $0x18] sm:$0xf]
    %v62 = vld [vmem:[%s3 + $0x1c] sm:$0xf]
    %v63 = vld [vmem:[%s3 + $0x20] sm:$0xf]
    %v64 = vld [vmem:[%s3 + $0x24] sm:$0xf]
    %v65 = vld [vmem:[%s3 + $0x28] sm:$0xf]
    %v66 = vld [vmem:[%s3 + $0x2c] sm:$0xf]
    %v67 = vld [vmem:[%s3 + $0x30] sm:$0xf]
    %v68 = vld [vmem:[%s3 + $0x34] sm:$0xf]
    %v69 = vld [vmem:[%s3 + $0x38] sm:$0xf]
    %v70 = vld [vmem:[%s3 + $0x3c] sm:$0xf]
    %v71 = vld [vmem:[%s3 + $0x40] sm:$0xf]
    %v72 = vld [vmem:[%s3 + $0x44] sm:$0xf]
    %v73 = vld [vmem:[%s3 + $0x48] sm:$0xf]
    %v74 = vld [vmem:[%s3 + $0x4c] sm:$0xf]
    %v75 = vld [vmem:[%s3 + $0x50] sm:$0xf]
    %v76 = vld [vmem:[%s3 + $0x54] sm:$0xf]
    %v77 = vld [vmem:[%s3 + $0x58] sm:$0xf]
    %v78 = vld [vmem:[%s3 + $0x5c] sm:$0xf]
    %v79 = vpack.c.bf16 %v43, %v42
    %v80 = vpack.c.bf16 %v51, %v50
    %v81 = vpack.c.bf16 %v49, %v48
    %v82 = vld [vmem:[%s4] sm:$0xff]
    %v83 = vld [vmem:[%s4 + $0x8] sm:$0xff]
    %v84 = vld [vmem:[%s4 + $0x10] sm:$0xff]
    %v85 = vld [vmem:[%s4 + $0x18] sm:$0xff]
    %v86 = vld [vmem:[%s4 + $0x20] sm:$0xff]
    %v87 = vld [vmem:[%s4 + $0x28] sm:$0xff]
    %v88 = vld [vmem:[%s4 + $0x30] sm:$0xff]
    %v89 = vld [vmem:[%s4 + $0x38] sm:$0xff]
    %v90 = vld [vmem:[%s4 + $0x40] sm:$0xff]
    %v91 = vld [vmem:[%s4 + $0x48] sm:$0xff]
    %v92 = vld [vmem:[%s4 + $0x50] sm:$0xff]
    %v93 = vld [vmem:[%s4 + $0x58] sm:$0xff]
    %v94 = vld [vmem:[%s4 + $0x60] sm:$0xff]
    %v95 = vld [vmem:[%s4 + $0x68] sm:$0xff]
    %v96 = vld [vmem:[%s4 + $0x70] sm:$0xff]
    %v97 = vld [vmem:[%s4 + $0x78] sm:$0xff]
    %v98 = vld [vmem:[%s4 + $0x80] sm:$0xff]
    %v99 = vld [vmem:[%s4 + $0x88] sm:$0xff]
    %v100 = vld [vmem:[%s4 + $0x90] sm:$0xff]
    %v101 = vld [vmem:[%s4 + $0x98] sm:$0xff]
    %v102 = vld [vmem:[%s4 + $0xa0] sm:$0xff]
    %v103 = vld [vmem:[%s4 + $0xa8] sm:$0xff]
    %v104 = vld [vmem:[%s4 + $0xb0] sm:$0xff]
    %v105 = vld [vmem:[%s4 + $0xb8] sm:$0xff]
    %107 = vset.pattern.permute.xlu0 0
    %108 = vperm.xlu0 %107, %v82
    %v109 = vpop.permute.xlu0 %108
    %112 = vset.pattern.permute.xlu0 0
    %113 = vperm.xlu0 %112, %v83
    %v114 = vpop.permute.xlu0 %113
    %117 = vset.pattern.permute.xlu0 0
    %118 = vperm.xlu0 %117, %v84
    %v119 = vpop.permute.xlu0 %118
    %122 = vset.pattern.permute.xlu0 0
    %123 = vperm.xlu0 %122, %v85
    %v124 = vpop.permute.xlu0 %123
    %127 = vset.pattern.permute.xlu0 0
    %128 = vperm.xlu0 %127, %v86
    %v129 = vpop.permute.xlu0 %128
    %132 = vset.pattern.permute.xlu0 0
    %133 = vperm.xlu0 %132, %v87
    %v134 = vpop.permute.xlu0 %133
    %137 = vset.pattern.permute.xlu0 0
    %138 = vperm.xlu0 %137, %v88
    %v139 = vpop.permute.xlu0 %138
    %142 = vset.pattern.permute.xlu0 0
    %143 = vperm.xlu0 %142, %v89
    %v144 = vpop.permute.xlu0 %143
    %147 = vset.pattern.permute.xlu0 0
    %148 = vperm.xlu0 %147, %v90
    %v149 = vpop.permute.xlu0 %148
    %152 = vset.pattern.permute.xlu0 0
    %153 = vperm.xlu0 %152, %v91
    %v154 = vpop.permute.xlu0 %153
    %157 = vset.pattern.permute.xlu0 0
    %158 = vperm.xlu0 %157, %v92
    %v159 = vpop.permute.xlu0 %158
    %162 = vset.pattern.permute.xlu0 0
    %163 = vperm.xlu0 %162, %v93
    %v164 = vpop.permute.xlu0 %163
    %167 = vset.pattern.permute.xlu0 0
    %168 = vperm.xlu0 %167, %v94
    %v169 = vpop.permute.xlu0 %168
    %172 = vset.pattern.permute.xlu0 0
    %173 = vperm.xlu0 %172, %v95
    %v174 = vpop.permute.xlu0 %173
    %177 = vset.pattern.permute.xlu0 0
    %178 = vperm.xlu0 %177, %v96
    %v179 = vpop.permute.xlu0 %178
    %182 = vset.pattern.permute.xlu0 0
    %183 = vperm.xlu0 %182, %v97
    %v184 = vpop.permute.xlu0 %183
    %187 = vset.pattern.permute.xlu0 0
    %188 = vperm.xlu0 %187, %v98
    %v189 = vpop.permute.xlu0 %188
    %192 = vset.pattern.permute.xlu0 0
    %193 = vperm.xlu0 %192, %v99
    %v194 = vpop.permute.xlu0 %193
    %197 = vset.pattern.permute.xlu0 0
    %198 = vperm.xlu0 %197, %v100
    %v199 = vpop.permute.xlu0 %198
    %202 = vset.pattern.permute.xlu0 0
    %203 = vperm.xlu0 %202, %v101
    %v204 = vpop.permute.xlu0 %203
    %207 = vset.pattern.permute.xlu0 0
    %208 = vperm.xlu0 %207, %v102
    %v209 = vpop.permute.xlu0 %208
    %212 = vset.pattern.permute.xlu0 0
    %213 = vperm.xlu0 %212, %v103
    %v214 = vpop.permute.xlu0 %213
    %217 = vset.pattern.permute.xlu0 0
    %218 = vperm.xlu0 %217, %v104
    %v219 = vpop.permute.xlu0 %218
    %222 = vset.pattern.permute.xlu0 0
    %223 = vperm.xlu0 %222, %v105
    %v224 = vpop.permute.xlu0 %223
    %v250 = vunpack.c.l.b16 %v55
    %v251 = vunpack.c.l.b16 %v56
    %v252 = vunpack.c.l.b16 %v57
    %v253 = vunpack.c.l.b16 %v58
    %v254 = vunpack.c.l.b16 %v59
    %v255 = vunpack.c.l.b16 %v60
    %v256 = vunpack.c.l.b16 %v61
    %v257 = vunpack.c.l.b16 %v62
    %v258 = vunpack.c.l.b16 %v63
    %v259 = vunpack.c.l.b16 %v64
    %v260 = vunpack.c.l.b16 %v65
    %v261 = vunpack.c.l.b16 %v66
    %v262 = vunpack.c.l.b16 %v67
    %v263 = vunpack.c.l.b16 %v68
    %v264 = vunpack.c.l.b16 %v69
    %v265 = vunpack.c.l.b16 %v70
    %v266 = vunpack.c.l.b16 %v71
    %v267 = vunpack.c.l.b16 %v72
    %v268 = vunpack.c.l.b16 %v73
    %v269 = vunpack.c.l.b16 %v74
    %v270 = vunpack.c.l.b16 %v75
    %v271 = vunpack.c.l.b16 %v76
    %v272 = vunpack.c.l.b16 %v77
    %v273 = vunpack.c.l.b16 %v78
    %v274 = vpack.c.b16 %v251, %v250
    %v275 = vpack.c.b16 %v253, %v252
    %v276 = vpack.c.b16 %v255, %v254
    %v277 = vpack.c.b16 %v257, %v256
    %v278 = vpack.c.b16 %v259, %v258
    %v279 = vpack.c.b16 %v261, %v260
    %v280 = vpack.c.b16 %v263, %v262
    %v281 = vpack.c.b16 %v265, %v264
    %v282 = vpack.c.b16 %v267, %v266
    %v283 = vpack.c.b16 %v269, %v268
    %v284 = vpack.c.b16 %v271, %v270
    %v285 = vpack.c.b16 %v273, %v272
    %vm286 = vcmask 392192
    %v288 = vsel %vm286, %v274, 0
    %v291 = vsel %vm286, %v275, 0
    %v294 = vsel %vm286, %v276, 0
    %v297 = vsel %vm286, %v277, 0
    %v300 = vsel %vm286, %v278, 0
    %v303 = vsel %vm286, %v279, 0
    %v306 = vsel %vm286, %v280, 0
    %v309 = vsel %vm286, %v281, 0
    %v312 = vsel %vm286, %v282, 0
    %v315 = vsel %vm286, %v283, 0
    %v318 = vsel %vm286, %v284, 0
    %v321 = vsel %vm286, %v285, 0
    %323 = vmatprep.subr.bf16.mxu0 0
    %324 = vmatpush1.bf16.msra.mxu0 %v79
    %325 = vmatprep.subr.bf16.mxu0 0
    %326 = vmatpush1.bf16.msra.mxu0 %v80
    %327 = vmatprep.subr.bf16.mxu0 0
    %328 = vmatpush1.bf16.msra.mxu0 %v81
    %329 = vmatprep.subr.bf16.mxu0 0
    %330 = vmatpush1.bf16.msra.mxu0 0
    %331 = vmatprep.subr.bf16.mxu0 0
    %332 = vmatpush1.bf16.msra.mxu0 0
    %333 = vmatprep.subr.bf16.mxu0 0
    %334 = vmatpush1.bf16.msra.mxu0 0
    %335 = vmatprep.subr.bf16.mxu0 0
    %336 = vmatpush1.bf16.msra.mxu0 0
    %337 = vmatprep.subr.bf16.mxu0 0
    %338 = vmatpush1.bf16.msra.mxu0 0
    %339 = vmatprep.subr.bf16.mxu0 0
    %340 = vmatpush1.bf16.msra.mxu0 0
    %341 = vmatprep.subr.bf16.mxu0 0
    %342 = vmatpush1.bf16.msra.mxu0 0
    %343 = vmatprep.subr.bf16.mxu0 0
    %344 = vmatpush1.bf16.msra.mxu0 0
    %345 = vmatprep.subr.bf16.mxu0 0
    %346 = vmatpush1.bf16.msra.mxu0 0
    %347 = vmatprep.subr.bf16.mxu0 0
    %348 = vmatpush1.bf16.msra.mxu0 0
    %349 = vmatprep.subr.bf16.mxu0 0
    %350 = vmatpush1.bf16.msra.mxu0 0
    %351 = vmatprep.subr.bf16.mxu0 0
    %352 = vmatpush1.bf16.msra.mxu0 0
    %353 = vmatprep.subr.bf16.mxu0 0
    %354 = vmatpush1.bf16.msra.mxu0 0
    %355 = vmatprep.mubr.bf16.mxu0 0
    %356 = vmatmul.mubr.bf16.gmra.mrb[0].mxu0 %v288
    %v357 = vpop.f32.mrb[0].mxu0
    %v358 = vadd.f32 %v109, %v357
    %v359 = vpop.f32.mrb[0].mxu0
    %v360 = vpop.f32.mrb[0].mxu0
    %v361 = vadd.f32 %v114, %v360
    %v362 = vpop.f32.mrb[0].mxu0
    %363 = vmatprep.mubr.bf16.mxu0 0
    %364 = vmatmul.mubr.bf16.gmra.mrb[0].mxu0 %v291
    %v365 = vpop.f32.mrb[0].mxu0
    %v366 = vadd.f32 %v119, %v365
    %v367 = vpop.f32.mrb[0].mxu0
    %v368 = vpop.f32.mrb[0].mxu0
    %v369 = vadd.f32 %v124, %v368
    %v370 = vpop.f32.mrb[0].mxu0
    %371 = vmatprep.mubr.bf16.mxu0 0
    %372 = vmatmul.mubr.bf16.gmra.mrb[0].mxu0 %v294
    %v373 = vpop.f32.mrb[0].mxu0
    %v374 = vadd.f32 %v129, %v373
    %v375 = vpop.f32.mrb[0].mxu0
    %v376 = vpop.f32.mrb[0].mxu0
    %v377 = vadd.f32 %v134, %v376
    %v378 = vpop.f32.mrb[0].mxu0
    %379 = vmatprep.mubr.bf16.mxu0 0
    %380 = vmatmul.mubr.bf16.gmra.mrb[0].mxu0 %v297
    %v381 = vpop.f32.mrb[0].mxu0
    %v382 = vadd.f32 %v139, %v381
    %v383 = vpop.f32.mrb[0].mxu0
    %v384 = vpop.f32.mrb[0].mxu0
    %v385 = vadd.f32 %v144, %v384
    %v386 = vpop.f32.mrb[0].mxu0
    %387 = vmatprep.mubr.bf16.mxu0 0
    %388 = vmatmul.mubr.bf16.gmra.mrb[0].mxu0 %v300
    %v389 = vpop.f32.mrb[0].mxu0
    %v390 = vadd.f32 %v149, %v389
    %v391 = vpop.f32.mrb[0].mxu0
    %v392 = vpop.f32.mrb[0].mxu0
    %v393 = vadd.f32 %v154, %v392
    %v394 = vpop.f32.mrb[0].mxu0
    %395 = vmatprep.mubr.bf16.mxu0 0
    %396 = vmatmul.mubr.bf16.gmra.mrb[0].mxu0 %v303
    %v397 = vpop.f32.mrb[0].mxu0
    %v398 = vadd.f32 %v159, %v397
    %v399 = vpop.f32.mrb[0].mxu0
    %v400 = vpop.f32.mrb[0].mxu0
    %v401 = vadd.f32 %v164, %v400
    %v402 = vpop.f32.mrb[0].mxu0
    %403 = vmatprep.mubr.bf16.mxu0 0
    %404 = vmatmul.mubr.bf16.gmra.mrb[0].mxu0 %v306
    %v405 = vpop.f32.mrb[0].mxu0
    %v406 = vadd.f32 %v169, %v405
    %v407 = vpop.f32.mrb[0].mxu0
    %v408 = vpop.f32.mrb[0].mxu0
    %v409 = vadd.f32 %v174, %v408
    %v410 = vpop.f32.mrb[0].mxu0
    %411 = vmatprep.mubr.bf16.mxu0 0
    %412 = vmatmul.mubr.bf16.gmra.mrb[0].mxu0 %v309
    %v413 = vpop.f32.mrb[0].mxu0
    %v414 = vadd.f32 %v179, %v413
    %v415 = vpop.f32.mrb[0].mxu0
    %v416 = vpop.f32.mrb[0].mxu0
    %v417 = vadd.f32 %v184, %v416
    %v418 = vpop.f32.mrb[0].mxu0
    %419 = vmatprep.mubr.bf16.mxu0 0
    %420 = vmatmul.mubr.bf16.gmra.mrb[0].mxu0 %v312
    %v421 = vpop.f32.mrb[0].mxu0
    %v422 = vadd.f32 %v189, %v421
    %v423 = vpop.f32.mrb[0].mxu0
    %v424 = vpop.f32.mrb[0].mxu0
    %v425 = vadd.f32 %v194, %v424
    %v426 = vpop.f32.mrb[0].mxu0
    %427 = vmatprep.mubr.bf16.mxu0 0
    %428 = vmatmul.mubr.bf16.gmra.mrb[0].mxu0 %v315
    %v429 = vpop.f32.mrb[0].mxu0
    %v430 = vadd.f32 %v199, %v429
    %v431 = vpop.f32.mrb[0].mxu0
    %v432 = vpop.f32.mrb[0].mxu0
    %v433 = vadd.f32 %v204, %v432
    %v434 = vpop.f32.mrb[0].mxu0
    %435 = vmatprep.mubr.bf16.mxu0 0
    %436 = vmatmul.mubr.bf16.gmra.mrb[0].mxu0 %v318
    %v437 = vpop.f32.mrb[0].mxu0
    %v438 = vadd.f32 %v209, %v437
    %v439 = vpop.f32.mrb[0].mxu0
    %v440 = vpop.f32.mrb[0].mxu0
    %v441 = vadd.f32 %v214, %v440
    %v442 = vpop.f32.mrb[0].mxu0
    %443 = vmatprep.mubr.bf16.mxu0 0
    %444 = vmatmul.mubr.bf16.gmra.mrb[0].mxu0 %v321
    %v445 = vpop.f32.mrb[0].mxu0
    %v446 = vadd.f32 %v219, %v445
    %v447 = vpop.f32.mrb[0].mxu0
    %v448 = vpop.f32.mrb[0].mxu0
    %v449 = vadd.f32 %v224, %v448
    %v450 = vpop.f32.mrb[0].mxu0
    %451 = vdwg.mxu0
    %v452 = vmax.f32 %v358, 0.0
    %v453 = vmax.f32 %v361, 0.0
    %v454 = vmax.f32 %v366, 0.0
    %v455 = vmax.f32 %v369, 0.0
    %v456 = vmax.f32 %v374, 0.0
    %v457 = vmax.f32 %v377, 0.0
    %v458 = vmax.f32 %v382, 0.0
    %v459 = vmax.f32 %v385, 0.0
    %v460 = vmax.f32 %v390, 0.0
    %v461 = vmax.f32 %v393, 0.0
    %v462 = vmax.f32 %v398, 0.0
    %v463 = vmax.f32 %v401, 0.0
    %v464 = vmax.f32 %v406, 0.0
    %v465 = vmax.f32 %v409, 0.0
    %v466 = vmax.f32 %v414, 0.0
    %v467 = vmax.f32 %v417, 0.0
    %v468 = vmax.f32 %v422, 0.0
    %v469 = vmax.f32 %v425, 0.0
    %v470 = vmax.f32 %v430, 0.0
    %v471 = vmax.f32 %v433, 0.0
    %v472 = vmax.f32 %v438, 0.0
    %v473 = vmax.f32 %v441, 0.0
    %v474 = vmax.f32 %v446, 0.0
    %v475 = vmax.f32 %v449, 0.0
    %v476 = vld [vmem:[%s5] sm:$0xff]
    %v477 = vld [vmem:[%s5 + $0x8] sm:$0xff]
    %v478 = vld [vmem:[%s5 + $0x10] sm:$0xff]
    %v479 = vpack.c.bf16 %v453, %v452
    %v480 = vpack.c.bf16 %v455, %v454
    %v481 = vpack.c.bf16 %v457, %v456
    %v482 = vpack.c.bf16 %v459, %v458
    %v483 = vpack.c.bf16 %v461, %v460
    %v484 = vpack.c.bf16 %v463, %v462
    %v485 = vpack.c.bf16 %v465, %v464
    %v486 = vpack.c.bf16 %v467, %v466
    %v487 = vpack.c.bf16 %v469, %v468
    %v488 = vpack.c.bf16 %v471, %v470
    %v489 = vpack.c.bf16 %v473, %v472
    %v490 = vpack.c.bf16 %v475, %v474
    %v491 = vld [vmem:[%s6] sm:$0xff]
    %v492 = vld [vmem:[%s6 + $0x8] sm:$0xff]
    %v493 = vld [vmem:[%s6 + $0x10] sm:$0xff]
    %495 = vset.pattern.permute.xlu0 0
    %496 = vperm.xlu0 %495, %v491
    %v497 = vpop.permute.xlu0 %496
    %500 = vset.pattern.permute.xlu0 0
    %501 = vperm.xlu0 %500, %v492
    %v502 = vpop.permute.xlu0 %501
    %505 = vset.pattern.permute.xlu0 0
    %506 = vperm.xlu0 %505, %v493
    %v507 = vpop.permute.xlu0 %506
    %v512 = vunpack.c.l.b16 %v476
    %v513 = vunpack.c.h.b16 %v476
    %v514 = vunpack.c.l.b16 %v477
    %v515 = vunpack.c.h.b16 %v477
    %v516 = vunpack.c.l.b16 %v478
    %v517 = vunpack.c.h.b16 %v478
    %v518 = vpack.c.b16 %v514, %v512
    %v519 = vpack.c.b16 %v515, %v513
    %v520 = vpack.c.b16 %v516, %v516
    %v521 = vpack.c.b16 %v517, %v517
    %vm524 = vcmask 523264
    %v526 = vsel %vm524, %v519, 0
    %v529 = vsel %vm524, %v521, 0
    %531 = vmatprep.subr.bf16.mxu0 0
    %532 = vmatpush1.bf16.msra.mxu0 %v479
    %533 = vmatprep.subr.bf16.mxu0 0
    %534 = vmatpush1.bf16.msra.mxu0 %v480
    %535 = vmatprep.subr.bf16.mxu0 0
    %536 = vmatpush1.bf16.msra.mxu0 %v481
    %537 = vmatprep.subr.bf16.mxu0 0
    %538 = vmatpush1.bf16.msra.mxu0 %v482
    %539 = vmatprep.subr.bf16.mxu0 0
    %540 = vmatpush1.bf16.msra.mxu0 %v483
    %541 = vmatprep.subr.bf16.mxu0 0
    %542 = vmatpush1.bf16.msra.mxu0 %v484
    %543 = vmatprep.subr.bf16.mxu0 0
    %544 = vmatpush1.bf16.msra.mxu0 %v485
    %545 = vmatprep.subr.bf16.mxu0 0
    %546 = vmatpush1.bf16.msra.mxu0 %v486
    %547 = vmatprep.subr.bf16.mxu0 0
    %548 = vmatpush1.bf16.msra.mxu0 %v487
    %549 = vmatprep.subr.bf16.mxu0 0
    %550 = vmatpush1.bf16.msra.mxu0 %v488
    %551 = vmatprep.subr.bf16.mxu0 0
    %552 = vmatpush1.bf16.msra.mxu0 %v489
    %553 = vmatprep.subr.bf16.mxu0 0
    %554 = vmatpush1.bf16.msra.mxu0 %v490
    %555 = vmatprep.subr.bf16.mxu0 0
    %556 = vmatpush1.bf16.msra.mxu0 0
    %557 = vmatprep.subr.bf16.mxu0 0
    %558 = vmatpush1.bf16.msra.mxu0 0
    %559 = vmatprep.subr.bf16.mxu0 0
    %560 = vmatpush1.bf16.msra.mxu0 0
    %561 = vmatprep.subr.bf16.mxu0 0
    %562 = vmatpush1.bf16.msra.mxu0 0
    %563 = vmatprep.mubr.bf16.mxu0 %v526
    %564 = vmatmul.mubr.bf16.gmra.mrb[0].mxu0 %v518
    %v565 = vpop.f32.mrb[0].mxu0
    %v566 = vadd.f32 %v497, %v565
    %v567 = vpop.f32.mrb[0].mxu0
    %v568 = vpop.f32.mrb[0].mxu0
    %v569 = vadd.f32 %v502, %v568
    %v570 = vpop.f32.mrb[0].mxu0
    %571 = vmatprep.mubr.bf16.mxu0 %v529
    %572 = vmatmul.mubr.bf16.gmra.mrb[0].mxu0 %v520
    %v573 = vpop.f32.mrb[0].mxu0
    %v574 = vadd.f32 %v507, %v573
    %v575 = vpop.f32.mrb[0].mxu0
    %v576 = vpop.f32.mrb[0].mxu0
    %v577 = vpop.f32.mrb[0].mxu0
    %578 = vdwg.mxu0
    %v579 = vld [vmem:[%s7] sm:$0xf]
    %v580 = vld [vmem:[%s7 + $0x4] sm:$0xf]
    %v581 = vld [vmem:[%s7 + $0x8] sm:$0xf]
    %v582 = vld [vmem:[%s7 + $0xc] sm:$0xf]
    %v583 = vld [vmem:[%s7 + $0x10] sm:$0xf]
    %v584 = vld [vmem:[%s7 + $0x14] sm:$0xf]
    %v585 = vld [vmem:[%s7 + $0x18] sm:$0xf]
    %v586 = vld [vmem:[%s7 + $0x1c] sm:$0xf]
    %v587 = vpack.c.bf16 %v569, %v566
    %v588 = vpack.c.bf16 %v574, %v574
    %v589 = vld [vmem:[%s8] sm:$0xff]
    %v590 = vld [vmem:[%s8 + $0x8] sm:$0xff]
    %v591 = vld [vmem:[%s8 + $0x10] sm:$0xff]
    %v592 = vld [vmem:[%s8 + $0x18] sm:$0xff]
    %v593 = vld [vmem:[%s8 + $0x20] sm:$0xff]
    %v594 = vld [vmem:[%s8 + $0x28] sm:$0xff]
    %v595 = vld [vmem:[%s8 + $0x30] sm:$0xff]
    %v596 = vld [vmem:[%s8 + $0x38] sm:$0xff]
    %598 = vset.pattern.permute.xlu0 0
    %599 = vperm.xlu0 %598, %v589
    %v600 = vpop.permute.xlu0 %599
    %603 = vset.pattern.permute.xlu0 0
    %604 = vperm.xlu0 %603, %v590
    %v605 = vpop.permute.xlu0 %604
    %608 = vset.pattern.permute.xlu0 0
    %609 = vperm.xlu0 %608, %v591
    %v610 = vpop.permute.xlu0 %609
    %613 = vset.pattern.permute.xlu0 0
    %614 = vperm.xlu0 %613, %v592
    %v615 = vpop.permute.xlu0 %614
    %618 = vset.pattern.permute.xlu0 0
    %619 = vperm.xlu0 %618, %v593
    %v620 = vpop.permute.xlu0 %619
    %623 = vset.pattern.permute.xlu0 0
    %624 = vperm.xlu0 %623, %v594
    %v625 = vpop.permute.xlu0 %624
    %628 = vset.pattern.permute.xlu0 0
    %629 = vperm.xlu0 %628, %v595
    %v630 = vpop.permute.xlu0 %629
    %633 = vset.pattern.permute.xlu0 0
    %634 = vperm.xlu0 %633, %v596
    %v635 = vpop.permute.xlu0 %634
    %v645 = vunpack.c.l.b16 %v579
    %v646 = vunpack.c.l.b16 %v580
    %v647 = vunpack.c.l.b16 %v581
    %v648 = vunpack.c.l.b16 %v582
    %v649 = vunpack.c.l.b16 %v583
    %v650 = vunpack.c.l.b16 %v584
    %v651 = vunpack.c.l.b16 %v585
    %v652 = vunpack.c.l.b16 %v586
    %v653 = vpack.c.b16 %v646, %v645
    %v654 = vpack.c.b16 %v648, %v647
    %v655 = vpack.c.b16 %v650, %v649
    %v656 = vpack.c.b16 %v652, %v651
    %vm657 = vcmask 195584
    %v659 = vsel %vm657, %v653, 0
    %v662 = vsel %vm657, %v654, 0
    %v665 = vsel %vm657, %v655, 0
    %v668 = vsel %vm657, %v656, 0
    %vm670 = vcmask 1043456
    %v672 = vsel %vm670, %v588, 0
    %674 = vmatprep.subr.bf16.mxu0 0
    %675 = vmatpush1.bf16.msra.mxu0 %v587
    %676 = vmatprep.subr.bf16.mxu0 0
    %677 = vmatpush1.bf16.msra.mxu0 %v672
    %678 = vmatprep.subr.bf16.mxu0 0
    %679 = vmatpush1.bf16.msra.mxu0 0
    %680 = vmatprep.subr.bf16.mxu0 0
    %681 = vmatpush1.bf16.msra.mxu0 0
    %682 = vmatprep.subr.bf16.mxu0 0
    %683 = vmatpush1.bf16.msra.mxu0 0
    %684 = vmatprep.subr.bf16.mxu0 0
    %685 = vmatpush1.bf16.msra.mxu0 0
    %686 = vmatprep.subr.bf16.mxu0 0
    %687 = vmatpush1.bf16.msra.mxu0 0
    %688 = vmatprep.subr.bf16.mxu0 0
    %689 = vmatpush1.bf16.msra.mxu0 0
    %690 = vmatprep.subr.bf16.mxu0 0
    %691 = vmatpush1.bf16.msra.mxu0 0
    %692 = vmatprep.subr.bf16.mxu0 0
    %693 = vmatpush1.bf16.msra.mxu0 0
    %694 = vmatprep.subr.bf16.mxu0 0
    %695 = vmatpush1.bf16.msra.mxu0 0
    %696 = vmatprep.subr.bf16.mxu0 0
    %697 = vmatpush1.bf16.msra.mxu0 0
    %698 = vmatprep.subr.bf16.mxu0 0
    %699 = vmatpush1.bf16.msra.mxu0 0
    %700 = vmatprep.subr.bf16.mxu0 0
    %701 = vmatpush1.bf16.msra.mxu0 0
    %702 = vmatprep.subr.bf16.mxu0 0
    %703 = vmatpush1.bf16.msra.mxu0 0
    %704 = vmatprep.subr.bf16.mxu0 0
    %705 = vmatpush1.bf16.msra.mxu0 0
    %706 = vmatprep.mubr.bf16.mxu0 0
    %707 = vmatmul.mubr.bf16.gmra.mrb[0].mxu0 %v659
    %v708 = vpop.f32.mrb[0].mxu0
    %v709 = vadd.f32 %v600, %v708
    %v710 = vpop.f32.mrb[0].mxu0
    %v711 = vpop.f32.mrb[0].mxu0
    %v712 = vadd.f32 %v605, %v711
    %v713 = vpop.f32.mrb[0].mxu0
    %714 = vmatprep.mubr.bf16.mxu0 0
    %715 = vmatmul.mubr.bf16.gmra.mrb[0].mxu0 %v662
    %v716 = vpop.f32.mrb[0].mxu0
    %v717 = vadd.f32 %v610, %v716
    %v718 = vpop.f32.mrb[0].mxu0
    %v719 = vpop.f32.mrb[0].mxu0
    %v720 = vadd.f32 %v615, %v719
    %v721 = vpop.f32.mrb[0].mxu0
    %722 = vmatprep.mubr.bf16.mxu0 0
    %723 = vmatmul.mubr.bf16.gmra.mrb[0].mxu0 %v665
    %v724 = vpop.f32.mrb[0].mxu0
    %v725 = vadd.f32 %v620, %v724
    %v726 = vpop.f32.mrb[0].mxu0
    %v727 = vpop.f32.mrb[0].mxu0
    %v728 = vadd.f32 %v625, %v727
    %v729 = vpop.f32.mrb[0].mxu0
    %730 = vmatprep.mubr.bf16.mxu0 0
    %731 = vmatmul.mubr.bf16.gmra.mrb[0].mxu0 %v668
    %v732 = vpop.f32.mrb[0].mxu0
    %v733 = vadd.f32 %v630, %v732
    %v734 = vpop.f32.mrb[0].mxu0
    %v735 = vpop.f32.mrb[0].mxu0
    %v736 = vadd.f32 %v635, %v735
    %v737 = vpop.f32.mrb[0].mxu0
    %738 = vdwg.mxu0
    %v739 = vmax.f32 %v709, 0.0
    %v740 = vmax.f32 %v712, 0.0
    %v741 = vmax.f32 %v717, 0.0
    %v742 = vmax.f32 %v720, 0.0
    %v743 = vmax.f32 %v725, 0.0
    %v744 = vmax.f32 %v728, 0.0
    %v745 = vmax.f32 %v733, 0.0
    %v746 = vmax.f32 %v736, 0.0
    %v747 = vld [vmem:[%s9] sm:$0xf]
    %v748 = vpack.c.bf16 %v740, %v739
    %v749 = vpack.c.bf16 %v742, %v741
    %v750 = vpack.c.bf16 %v744, %v743
    %v751 = vpack.c.bf16 %v746, %v745
    %v752 = vld [vmem:[%s10] sm:$0xff]
    %754 = vset.pattern.permute.xlu0 0
    %755 = vperm.xlu0 %754, %v752
    %v756 = vpop.permute.xlu0 %755
    %v759 = vsel %vm524, %v747, 0
    %761 = vmatprep.subr.bf16.mxu0 0
    %762 = vmatpush1.bf16.msra.mxu0 %v748
    %763 = vmatprep.subr.bf16.mxu0 0
    %764 = vmatpush1.bf16.msra.mxu0 %v749
    %765 = vmatprep.subr.bf16.mxu0 0
    %766 = vmatpush1.bf16.msra.mxu0 %v750
    %767 = vmatprep.subr.bf16.mxu0 0
    %768 = vmatpush1.bf16.msra.mxu0 %v751
    %769 = vmatprep.subr.bf16.mxu0 0
    %770 = vmatpush1.bf16.msra.mxu0 0
    %771 = vmatprep.subr.bf16.mxu0 0
    %772 = vmatpush1.bf16.msra.mxu0 0
    %773 = vmatprep.subr.bf16.mxu0 0
    %774 = vmatpush1.bf16.msra.mxu0 0
    %775 = vmatprep.subr.bf16.mxu0 0
    %776 = vmatpush1.bf16.msra.mxu0 0
    %777 = vmatprep.subr.bf16.mxu0 0
    %778 = vmatpush1.bf16.msra.mxu0 0
    %779 = vmatprep.subr.bf16.mxu0 0
    %780 = vmatpush1.bf16.msra.mxu0 0
    %781 = vmatprep.subr.bf16.mxu0 0
    %782 = vmatpush1.bf16.msra.mxu0 0
    %783 = vmatprep.subr.bf16.mxu0 0
    %784 = vmatpush1.bf16.msra.mxu0 0
    %785 = vmatprep.subr.bf16.mxu0 0
    %786 = vmatpush1.bf16.msra.mxu0 0
    %787 = vmatprep.subr.bf16.mxu0 0
    %788 = vmatpush1.bf16.msra.mxu0 0
    %789 = vmatprep.subr.bf16.mxu0 0
    %790 = vmatpush1.bf16.msra.mxu0 0
    %791 = vmatprep.subr.bf16.mxu0 0
    %792 = vmatpush1.bf16.msra.mxu0 0
    %793 = vmatprep.mubr.bf16.mxu0 0
    %794 = vmatmul.mubr.bf16.gmra.mrb[0].mxu0 %v759
    %v795 = vpop.f32.mrb[0].mxu0
    %v796 = vadd.f32 %v756, %v795
    %v797 = vpop.f32.mrb[0].mxu0
    %v798 = vpop.f32.mrb[0].mxu0
    %v799 = vpop.f32.mrb[0].mxu0
    %800 = vdwg.mxu0
    %v801 = vtanh.pop %v796
    %v802 = vmul.f32 %v42, %v42
    %v803 = vmul.f32 %v43, %v43
    %v804 = vsel %vm52, %v802, 0.0
    %v805 = vsel %vm52, %v803, 0.0
    %v806 = vadd.f32 %v804, %v805
    %v807 = vrot.slane %v806, 4
    %v808 = vadd.f32 %v806, %v807
    %v809 = vrot.slane %v808, 2
    %v810 = vadd.f32 %v808, %v809
    %v811 = vrot.slane %v810, 1
    %v812 = vadd.f32 %v810, %v811
    %v813 = vrcp.pop 16.0
    %v814 = vmul.f32 %v812, %v813
    %v815 = vrsqrt.pop %v814
    %v816 = vmul.f32 %v814, %v815
    %vm817 = vcmp.eq.f32.partialorder %v814, inf
    %v818 = vsel %vm817, %v814, %v816
    %vm819 = vcmp.eq.f32.partialorder %v814, 0.0
    %v820 = vand.u32 %v814, 2147483648
    %v821 = vsel %vm819, %v820, %v818
    %v822 = vsub.f32 %v821, 1.0
    %v823 = vmul.f32 %v822, 2.5
    %v824 = vtanh.pop %v823
    %v825 = vadd.f32 %v824, 1.0
    %v826 = vmul.f32 %v825, 0.5
    %v827 = vmul.f32 %v826, %v801
    %828 = vst.msk [vmem:[#allocation2] sm:$0xff] %vm52, %v827
    // Predicated region
    $region46: #{tpu_custom_call.1} parent=1 // pred_check
      _
    $region47: #{tpu_custom_call.1} parent=1 // pred_check_branch
      %830 = sbr.rel (0) target = $region49
    $region48: #{tpu_custom_call.1} parent=1 // pred_region
      %s832 = ssub.s32 128, 128
      %833 = vsyncadd [#allocation3], %s832
      %s835 = sshll.u32 [#allocation2], 4
      %s836 = int_to_ptr.vmem [resolvable:$true] %s835
      %838 = dma.vmem_to_hbm [thread:$0]  %s836, 128, %s11, [#allocation3]
    $region49: #{tpu_custom_call.1} parent=1 // pred_fallthru
      _
    // Predicated region
    $region50: #{tpu_custom_call.1} parent=1 // pred_check
      _
    $region51: #{tpu_custom_call.1} parent=1 // pred_check_branch
      %840 = sbr.rel (0) target = $region53
    $region52: #{tpu_custom_call.1} parent=1 // pred_region
      _
    $region53: #{tpu_custom_call.1} parent=1 // pred_fallthru
      _
    // Predicated region
    $region54: #{tpu_custom_call.1} parent=1 // pred_check
      _
    $region55: #{tpu_custom_call.1} parent=1 // pred_check_branch
      %842 = sbr.rel (0) target = $region57
    $region56: #{tpu_custom_call.1} parent=1 // pred_region
      %843 = dma.done [#allocation3], 128
    $region57: #{tpu_custom_call.1} parent=1 // pred_fallthru
      _
    // Predicated region
    $region58: #{tpu_custom_call.1} parent=1 // pred_check
      _
    $region59: #{tpu_custom_call.1} parent=1 // pred_check_branch
      %845 = sbr.rel (0) target = $region61
    $region60: #{tpu_custom_call.1} parent=1 // pred_region
      _
    $region61: #{tpu_custom_call.1} parent=1 // pred_fallthru
      _
    %846 = vsyncpa [#allocation3], 1

</llo_original>
